<compile_context>
chip_gen: v6e
topology: v6e:2x2x1
jax: 0.10.0
libtpu: 0.0.40
codegen_flags: <defaults>
</compile_context>

<pallas_src>
import functools

import jax
import jax.numpy as jnp
import numpy as np
from jax import lax
from jax.experimental import pallas as pl
from jax.experimental.pallas import tpu as pltpu

LOC_WEIGHT = 0.05
SCALE_FACTOR = 256.0 / 32.0   # = 8.0, as in the PyTorch module


def _round_up(x, m):
    return (x + m - 1) // m * m


@functools.lru_cache(maxsize=None)
def _hw_budgets():
    """Return (per-tile VMEM budget bytes, vmem_limit_bytes) for this chip."""
    vmem_phys = 64 * 1024 * 1024          # conservative fallback (v7x-sized)
    try:
        vmem_phys = int(pltpu.get_tpu_info().vmem_capacity_bytes)
    except Exception:
        pass
    if vmem_phys <= 64 * 1024 * 1024:     # v7x-class: 64 MiB VMEM per TC
        return 14 * 1024 * 1024, 32 * 1024 * 1024
    return 48 * 1024 * 1024, 64 * 1024 * 1024   # v5e / v6e: 128 MiB VMEM


def _keypoint_stats_kernel(pred_ref, tgt_ref, out_ref):
    lp = pred_ref.shape[1]
    # DMA in native dtype (bf16 inputs supported); upcast in VMEM.
    x = pred_ref[...].astype(jnp.float32)        # (T, L) logits
    y = tgt_ref[...].astype(jnp.float32)         # (T, L) targets

    # BCEWithLogits, numerically stable elementwise form.
    bce = jnp.maximum(x, 0.0) - x * y + jnp.log(1.0 + jnp.exp(-jnp.abs(x)))

    # Per-row reductions on the VPU/XLU (kernel is HBM-bound, these are free)
    # -> full f32 accumulation, no MXU precision hazard.
    row_bce = jnp.sum(bce, axis=1, keepdims=True)          # (T, 1)
    row_ysum = jnp.sum(y, axis=1, keepdims=True)           # (T, 1)
    valid = (row_ysum > 0.0).astype(jnp.float32)           # (T, 1)

    # Per-row argmax, first-max tie-break (matches torch.max).
    iota = lax.broadcasted_iota(jnp.int32, (1, lp), 1)
    xmax = jnp.max(x, axis=1, keepdims=True)
    pidx = jnp.min(jnp.where(x == xmax, iota, lp), axis=1, keepdims=True)  # (T,1)
    ymax = jnp.max(y, axis=1, keepdims=True)
    tidx = jnp.min(jnp.where(y == ymax, iota, lp), axis=1, keepdims=True)  # (T,1)

    # Lane-dense 128-wide per-row record (unmasked vst).
    col_i = lax.broadcasted_iota(jnp.int32, out_ref.shape, 1)
    out = jnp.where(col_i == 0, row_bce, 0.0)
    out = jnp.where(col_i == 1, pidx.astype(jnp.float32), out)
    out = jnp.where(col_i == 2, tidx.astype(jnp.float32), out)
    out = jnp.where(col_i == 3, valid, out)
    out_ref[...] = out


@jax.jit
def combined_keypoint_loss(pred_scoremaps, pred_offsets, target_heatmaps):
    """pred_scoremaps: (B,K,H,W); pred_offsets: (B,K,2,H,W); target_heatmaps: (B,K,H,W)."""
    B, K, H, W = pred_scoremaps.shape
    BK, L = B * K, H * W
    if L >= (1 << 24):
        raise ValueError("flat heatmap index must stay below 2**24 for an exact f32 round-trip")

    # Free contiguous views -- no padding copies, no dtype upcast in HBM.
    pred2d = pred_scoremaps.reshape(BK, L)
    tgt2d = target_heatmaps.reshape(BK, L)

    budget, vmem_limit = _hw_budgets()
    # double-buffered input blocks + ~6 live f32 (T,L) temporaries
    bytes_per = 2 * (pred2d.dtype.itemsize + tgt2d.dtype.itemsize) + 24
    if 8 * bytes_per * L > budget:
        # TODO(synk): add a lane-dim grid axis with carried max/argmax scratch for very large heatmaps.
        raise ValueError(f"heatmap {H}x{W} too large for a single lane-extent block on this TPU")

    rows = max(8, (budget // (bytes_per * L)) // 8 * 8)
    half = max(8, _round_up(-(-BK // 2), 8))        # keep >= 2 blocks when BK > 8 (v7x megacore)
    tile_bk = int(min(rows, half, _round_up(BK, 8)))
    nb = -(-BK // tile_bk)                          # cdiv; last block may be partial (rows discarded below)

    parts = pl.pallas_call(
        _keypoint_stats_kernel,
        out_shape=jax.ShapeDtypeStruct((nb * tile_bk, 128), jnp.float32),
        grid=(nb,),
        in_specs=[
            pl.BlockSpec((tile_bk, L), lambda i: (i, 0)),
            pl.BlockSpec((tile_bk, L), lambda i: (i, 0)),
        ],
        out_specs=pl.BlockSpec((tile_bk, 128), lambda i: (i, 0)),
        compiler_params=pltpu.CompilerParams(
            dimension_semantics=("parallel",),
            vmem_limit_bytes=vmem_limit),
    )(pred2d, tgt2d)

    rec = parts[:BK]                                # drop garbage rows of a partial last block
    bce_total = jnp.sum(rec[:, 0])
    pred_idx = rec[:, 1].astype(jnp.int32)          # exact: L < 2**24
    tgt_idx = rec[:, 2].astype(jnp.int32)
    valid = rec[:, 3] > 0.0

    pred_y = (pred_idx // W).astype(jnp.float32) * SCALE_FACTOR
    pred_x = (pred_idx % W).astype(jnp.float32) * SCALE_FACTOR
    tgt_y = (tgt_idx // W).astype(jnp.float32) * SCALE_FACTOR
    tgt_x = (tgt_idx % W).astype(jnp.float32) * SCALE_FACTOR

    # Gather only the 2*BK predicted offsets actually consumed -- the offset
    # planes never stream through the Pallas kernel (halves kernel HBM bytes).
    off3d = pred_offsets.reshape(BK, 2, L)
    off_at = jnp.take_along_axis(off3d, pred_idx[:, None, None], axis=2)[..., 0]
    off_at = off_at.astype(jnp.float32)             # (BK, 2): [:,0]=x-chan, [:,1]=y-chan
    p_off_x, p_off_y = off_at[:, 0], off_at[:, 1]

    t_off_x = tgt_x - pred_x
    t_off_y = tgt_y - pred_y

    def smooth_l1(d):
        ad = jnp.abs(d)
        return jnp.where(ad < 1.0, 0.5 * d * d, ad - 0.5)

    loc_terms = smooth_l1(p_off_x - t_off_x) + smooth_l1(p_off_y - t_off_y)   # (BK,)
    cnt = jnp.sum(valid.astype(jnp.float32))
    loc_sum = jnp.sum(jnp.where(valid, loc_terms, 0.0))
    loc_loss = jnp.where(cnt > 0.0, loc_sum / jnp.maximum(2.0 * cnt, 1.0), jnp.float32(0.0))
    sm_loss = bce_total / jnp.float32(BK * L)        # BCEWithLogitsLoss mean over all elements
    total_loss = sm_loss + LOC_WEIGHT * loc_loss
    return total_loss, sm_loss, loc_loss


def _reference(pred_scoremaps, pred_offsets, target_heatmaps):
    """Pure-JAX mirror of the PyTorch module (for correctness checking)."""
    B, K, H, W = pred_scoremaps.shape
    BK, L = B * K, H * W
    x = pred_scoremaps.reshape(BK, L).astype(jnp.float32)
    y = target_heatmaps.reshape(BK, L).astype(jnp.float32)
    bce = jnp.maximum(x, 0.0) - x * y + jnp.log1p(jnp.exp(-jnp.abs(x)))
    sm = jnp.mean(bce)
    pidx = jnp.argmax(x, axis=1)
    tidx = jnp.argmax(y, axis=1)
    s = SCALE_FACTOR
    py, px = (pidx // W).astype(jnp.float32) * s, (pidx % W).astype(jnp.float32) * s
    ty, tx = (tidx // W).astype(jnp.float32) * s, (tidx % W).astype(jnp.float32) * s
    off = pred_offsets.reshape(BK, 2, L).astype(jnp.float32)
    pox = off[jnp.arange(BK), 0, pidx]
    poy = off[jnp.arange(BK), 1, pidx]
    tox, toy = tx - px, ty - py

    def sl1(d):
        ad = jnp.abs(d)
        return jnp.where(ad < 1.0, 0.5 * d * d, ad - 0.5)

    valid = jnp.sum(y, axis=1) > 0.0
    terms = sl1(pox - tox) + sl1(poy - toy)
    cnt = jnp.sum(valid.astype(jnp.float32))
    loc = jnp.where(cnt > 0.0, jnp.sum(jnp.where(valid, terms, 0.0)) / jnp.maximum(2.0 * cnt, 1.0), 0.0)
    return sm + LOC_WEIGHT * loc, sm, loc


if __name__ == "__main__":
    # Small shapes consistent with the module: B=2, K=4 keypoints, 16x16 heatmaps.
    B, K, H, W = 2, 4, 16, 16
    key = jax.random.PRNGKey(0)
    k1, k2, k3 = jax.random.split(key, 3)

    pred_scoremaps = jax.random.normal(k1, (B, K, H, W), dtype=jnp.float32)
    pred_offsets = jax.random.normal(k2, (B, K, 2, H, W), dtype=jnp.float32)
    target_heatmaps = jax.random.uniform(k3, (B, K, H, W), dtype=jnp.float32)

    total_loss, scoremap_loss, loc_loss = combined_keypoint_loss(
        pred_scoremaps, pred_offsets, target_heatmaps)
    jax.block_until_ready((total_loss, scoremap_loss, loc_loss))

    ref_total, ref_sm, ref_loc = _reference(pred_scoremaps, pred_offsets, target_heatmaps)
    np.testing.assert_allclose(np.array(total_loss), np.array(ref_total), rtol=1e-4, atol=1e-5)
    np.testing.assert_allclose(np.array(scoremap_loss), np.array(ref_sm), rtol=1e-4, atol=1e-5)
    np.testing.assert_allclose(np.array(loc_loss), np.array(ref_loc), rtol=1e-4, atol=1e-5)

    assert bool(jnp.isfinite(total_loss))
    assert bool(jnp.isfinite(scoremap_loss))
    assert bool(jnp.isfinite(loc_loss))
    print("KERNEL_OK")
</pallas_src>

<mosaic_0001>
module attributes {stable_mosaic.version = 11 : i64} {
  func.func @_keypoint_stats_kernel(%arg0: i32, %arg1: memref<8x256xf32, #tpu.memory_space<vmem>>, %arg2: memref<8x256xf32, #tpu.memory_space<vmem>>, %arg3: memref<8x128xf32, #tpu.memory_space<vmem>>) attributes {dimension_semantics = [#tpu.dimension_semantics<parallel>], iteration_bounds = array<i64: 1>, scalar_prefetch = 0 : i64, scratch_operands = 0 : i64, tpu.core_type = #tpu.core_type<tc>, window_params = [{transform_indices = @transform_0, window_bounds = array<i64: 8, 256>}, {transform_indices = @transform_1, window_bounds = array<i64: 8, 256>}, {transform_indices = @transform_2, window_bounds = array<i64: 8, 128>}]} {
    %c0 = arith.constant 0 : index
    %c0_0 = arith.constant 0 : index
    %0 = vector.load %arg1[%c0, %c0_0] : memref<8x256xf32, #tpu.memory_space<vmem>>, vector<8x256xf32>
    %c0_1 = arith.constant 0 : index
    %c0_2 = arith.constant 0 : index
    %1 = vector.load %arg2[%c0_1, %c0_2] : memref<8x256xf32, #tpu.memory_space<vmem>>, vector<8x256xf32>
    %cst = arith.constant 0.000000e+00 : f32
    %2 = vector.broadcast %cst : f32 to vector<8x256xf32>
    %3 = arith.maximumf %0, %2 : vector<8x256xf32>
    %4 = arith.mulf %0, %1 : vector<8x256xf32>
    %5 = arith.subf %3, %4 : vector<8x256xf32>
    %6 = math.absf %0 : vector<8x256xf32>
    %cst_3 = arith.constant 0.000000e+00 : f32
    %7 = vector.broadcast %cst_3 : f32 to vector<8x256xf32>
    %8 = arith.subf %7, %6 : vector<8x256xf32>
    %9 = math.exp %8 : vector<8x256xf32>
    %cst_4 = arith.constant 1.000000e+00 : f32
    %10 = vector.broadcast %cst_4 : f32 to vector<8x256xf32>
    %11 = arith.addf %10, %9 : vector<8x256xf32>
    %12 = math.log %11 : vector<8x256xf32>
    %13 = arith.addf %5, %12 : vector<8x256xf32>
    %cst_5 = arith.constant dense<0.000000e+00> : vector<8xf32>
    %14 = vector.multi_reduction <add>, %13, %cst_5 [1] : vector<8x256xf32> to vector<8xf32>
    %15 = vector.shape_cast %14 : vector<8xf32> to vector<8x1xf32>
    %cst_6 = arith.constant dense<0.000000e+00> : vector<8xf32>
    %16 = vector.multi_reduction <add>, %1, %cst_6 [1] : vector<8x256xf32> to vector<8xf32>
    %17 = vector.shape_cast %16 : vector<8xf32> to vector<8x1xf32>
    %cst_7 = arith.constant 0.000000e+00 : f32
    %18 = vector.broadcast %cst_7 : f32 to vector<8x1xf32>
    %19 = arith.cmpf ogt, %17, %18 : vector<8x1xf32>
    %20 = arith.extui %19 : vector<8x1xi1> to vector<8x1xi32>
    %21 = arith.sitofp %20 : vector<8x1xi32> to vector<8x1xf32>
    %22 = tpu.iota {dimensions = array<i32: 1>} : vector<1x256xi32>
    %cst_8 = arith.constant dense<0xFF800000> : vector<8xf32>
    %23 = vector.multi_reduction <maximumf>, %0, %cst_8 [1] : vector<8x256xf32> to vector<8xf32>
    %24 = vector.shape_cast %23 : vector<8xf32> to vector<8x1xf32>
    %25 = vector.broadcast %24 : vector<8x1xf32> to vector<8x256xf32>
    %26 = arith.cmpf oeq, %0, %25 : vector<8x256xf32>
    %c256_i32 = arith.constant 256 : i32
    %27 = vector.shape_cast %22 : vector<1x256xi32> to vector<1x256xi32>
    %28 = vector.broadcast %27 : vector<1x256xi32> to vector<8x256xi32>
    %29 = vector.broadcast %c256_i32 : i32 to vector<8x256xi32>
    %30 = arith.select %26, %28, %29 : vector<8x256xi1>, vector<8x256xi32>
    %cst_9 = arith.constant dense<2147483647> : vector<8xi32>
    %31 = vector.multi_reduction <minsi>, %30, %cst_9 [1] : vector<8x256xi32> to vector<8xi32>
    %32 = vector.shape_cast %31 : vector<8xi32> to vector<8x1xi32>
    %cst_10 = arith.constant dense<0xFF800000> : vector<8xf32>
    %33 = vector.multi_reduction <maximumf>, %1, %cst_10 [1] : vector<8x256xf32> to vector<8xf32>
    %34 = vector.shape_cast %33 : vector<8xf32> to vector<8x1xf32>
    %35 = vector.broadcast %34 : vector<8x1xf32> to vector<8x256xf32>
    %36 = arith.cmpf oeq, %1, %35 : vector<8x256xf32>
    %c256_i32_11 = arith.constant 256 : i32
    %37 = vector.shape_cast %22 : vector<1x256xi32> to vector<1x256xi32>
    %38 = vector.broadcast %37 : vector<1x256xi32> to vector<8x256xi32>
    %39 = vector.broadcast %c256_i32_11 : i32 to vector<8x256xi32>
    %40 = arith.select %36, %38, %39 : vector<8x256xi1>, vector<8x256xi32>
    %cst_12 = arith.constant dense<2147483647> : vector<8xi32>
    %41 = vector.multi_reduction <minsi>, %40, %cst_12 [1] : vector<8x256xi32> to vector<8xi32>
    %42 = vector.shape_cast %41 : vector<8xi32> to vector<8x1xi32>
    %43 = tpu.iota {dimensions = array<i32: 1>} : vector<8x128xi32>
    %c0_i32 = arith.constant 0 : i32
    %44 = vector.broadcast %c0_i32 : i32 to vector<8x128xi32>
    %45 = arith.cmpi eq, %43, %44 : vector<8x128xi32>
    %cst_13 = arith.constant 0.000000e+00 : f32
    %46 = vector.shape_cast %15 : vector<8x1xf32> to vector<8x1xf32>
    %47 = vector.broadcast %46 : vector<8x1xf32> to vector<8x128xf32>
    %48 = vector.broadcast %cst_13 : f32 to vector<8x128xf32>
    %49 = arith.select %45, %47, %48 : vector<8x128xi1>, vector<8x128xf32>
    %c1_i32 = arith.constant 1 : i32
    %50 = vector.broadcast %c1_i32 : i32 to vector<8x128xi32>
    %51 = arith.cmpi eq, %43, %50 : vector<8x128xi32>
    %52 = arith.sitofp %32 : vector<8x1xi32> to vector<8x1xf32>
    %53 = vector.shape_cast %52 : vector<8x1xf32> to vector<8x1xf32>
    %54 = vector.broadcast %53 : vector<8x1xf32> to vector<8x128xf32>
    %55 = arith.select %51, %54, %49 : vector<8x128xi1>, vector<8x128xf32>
    %c2_i32 = arith.constant 2 : i32
    %56 = vector.broadcast %c2_i32 : i32 to vector<8x128xi32>
    %57 = arith.cmpi eq, %43, %56 : vector<8x128xi32>
    %58 = arith.sitofp %42 : vector<8x1xi32> to vector<8x1xf32>
    %59 = vector.shape_cast %58 : vector<8x1xf32> to vector<8x1xf32>
    %60 = vector.broadcast %59 : vector<8x1xf32> to vector<8x128xf32>
    %61 = arith.select %57, %60, %55 : vector<8x128xi1>, vector<8x128xf32>
    %c3_i32 = arith.constant 3 : i32
    %62 = vector.broadcast %c3_i32 : i32 to vector<8x128xi32>
    %63 = arith.cmpi eq, %43, %62 : vector<8x128xi32>
    %64 = vector.shape_cast %21 : vector<8x1xf32> to vector<8x1xf32>
    %65 = vector.broadcast %64 : vector<8x1xf32> to vector<8x128xf32>
    %66 = arith.select %63, %65, %61 : vector<8x128xi1>, vector<8x128xf32>
    %c0_14 = arith.constant 0 : index
    %c0_15 = arith.constant 0 : index
    %67 = vector.load %arg3[%c0_14, %c0_15] : memref<8x128xf32, #tpu.memory_space<vmem>>, vector<8x128xf32>
    tpu.vector_store %arg3[%c0_14, %c0_15], %66 {strides = array<i32>} : memref<8x128xf32, #tpu.memory_space<vmem>>, vector<8x128xf32>,
    return
  }
  func.func @transform_0(%arg0: i32) -> (i32, i32) {
    %c0_i32 = arith.constant 0 : i32
    %c0_i32_0 = arith.constant 0 : i32
    return %arg0, %c0_i32 : i32, i32
  }
  func.func @transform_1(%arg0: i32) -> (i32, i32) {
    %c0_i32 = arith.constant 0 : i32
    %c0_i32_0 = arith.constant 0 : i32
    return %arg0, %c0_i32 : i32, i32
  }
  func.func @transform_2(%arg0: i32) -> (i32, i32) {
    %c0_i32 = arith.constant 0 : i32
    %c0_i32_0 = arith.constant 0 : i32
    return %arg0, %c0_i32 : i32, i32
  }
}

</mosaic_0001>

<llo_original>
// kernel: combined_keypoint_loss.1
$region0: #{combined_keypoint_loss.1}
  #allocation0 [shape = 'u32[]', space=smem, size = 0x4, offset = 0x4, fixed_abs, tag = 'smem constant byte address 0x4 - core index']
  #allocation1 [shape = 'u32[144,128]{1,0:T(1,128)}', space=vmem, size = 0x12000, scoped, tag = 'internal scratch']
  %s0 = inlined_call_operand.vmem [shape: f32[8,256], index: 0, kind: input, shape index: {}]
  %s1 = inlined_call_operand.vmem [shape: f32[8,256], index: 1, kind: input, shape index: {}]
  %s2 = inlined_call_operand.vmem [shape: f32[8,128], index: 2, kind: output, shape index: {}]
  %s3 = sld [smem:[#allocation0]]
  $region18: #{combined_keypoint_loss.1} parent=0
    _
  %s5 = ssub.s32 1, %s3
  %s6 = scalar_select 0, %s5, %s3
  // Predicated region
  $region2: #{combined_keypoint_loss.1} parent=0 // pred_check
    _
  $region3: #{combined_keypoint_loss.1} parent=0 // pred_check_branch
    %8 = sbr.rel (0) target = $region5
  $region4: #{combined_keypoint_loss.1} parent=0 // pred_region
    _
  $region5: #{combined_keypoint_loss.1} parent=0 // pred_fallthru
    _
  // Predicated region
  $region6: #{combined_keypoint_loss.1} parent=0 // pred_check
    _
  $region7: #{combined_keypoint_loss.1} parent=0 // pred_check_branch
    %10 = sbr.rel (0) target = $region9
  $region8: #{combined_keypoint_loss.1} parent=0 // pred_region
    _
  $region9: #{combined_keypoint_loss.1} parent=0 // pred_fallthru
    _
  %v11 = vld [vmem:[%s0] sm:$0xff]
  %v12 = vld [vmem:[%s0 + $0x8] sm:$0xff]
  %v13 = vld [vmem:[%s1] sm:$0xff]
  %v14 = vld [vmem:[%s1 + $0x8] sm:$0xff]
  %v15 = vmax.f32 %v11, 0.0
  %v16 = vmax.f32 %v12, 0.0
  %v17 = vmul.f32 %v11, %v13
  %v18 = vmul.f32 %v12, %v14
  %v19 = vsub.f32 %v15, %v17
  %v20 = vsub.f32 %v16, %v18
  %v21 = vand.u32 2147483647, %v11
  %v22 = vand.u32 2147483647, %v12
  %v23 = vsub.f32 0.0, %v21
  %v24 = vsub.f32 0.0, %v22
  %v25 = vmul.f32 %v23, 1.442695
  %v26 = vpow.pop %v25
  %v27 = vmul.f32 %v24, 1.442695
  %v28 = vpow.pop %v27
  %v29 = vadd.f32 %v26, 1.0
  %v30 = vadd.f32 %v28, 1.0
  %v31 = vlog2.pop %v29
  %v32 = vmul.f32 %v31, 0.6931472
  %v33 = vlog2.pop %v30
  %v34 = vmul.f32 %v33, 0.6931472
  %v35 = vadd.f32 %v19, %v32
  %v36 = vadd.f32 %v20, %v34
  %v37 = vadd.f32 %v35, %v36
  %38 = vadd.xlane.f32.xlu0 %v37
  %v39 = vpop.xlane.xlu0 %38
  %v40 = vadd.f32 %v13, %v14
  %41 = vadd.xlane.f32.xlu0 %v40
  %v42 = vpop.xlane.xlu0 %41
  %vm43 = vcmp.gt.f32.partialorder %v42, 0.0
  %v44 = vsel %vm43, 1, 0
  %v45 = vcvt.s32.f32 %v44
  %v46 = vlaneseq
  %v47 = vand.u32 %v46, 127
  %v48 = vadd.s32 %v47, 128
  %v49 = vmax.f32 %v11, %v12
  %50 = vmax.xlane.f32.xlu0 %v49
  %v51 = vpop.xlane.xlu0 %50
  %vm52 = vcmp.eq.f32.partialorder %v11, %v51
  %vm53 = vcmp.eq.f32.partialorder %v12, %v51
  %v54 = vsel %vm52, %v47, 256
  %v55 = vsel %vm53, %v48, 256
  %vm56 = vcmp.lt.s32.totalorder %v54, %v55
  %v57 = vsel %vm56, %v54, %v55
  %v58 = vand.u32 %v57, 65535
  %v59 = vshra.s32 %v57, 16
  %v60 = vcvt.s32.f32 %v58
  %v61 = vcvt.s32.f32 %v59
  %62 = vmin.xlane.f32.xlu0 %v61
  %v63 = vpop.xlane.xlu0 %62
  %vm64 = vcmp.eq.f32.partialorder %v61, %v63
  %v65 = vsel %vm64, %v60, inf
  %66 = vmin.xlane.f32.xlu0 %v65
  %v67 = vpop.xlane.xlu0 %66
  %v68 = vcvt.f32.s32 %v67
  %v69 = vcvt.f32.s32 %v63
  %v70 = vshll.u32 %v69, 16
  %v71 = vadd.s32 %v70, %v68
  %v72 = vmax.f32 %v13, %v14
  %73 = vmax.xlane.f32.xlu0 %v72
  %v74 = vpop.xlane.xlu0 %73
  %vm75 = vcmp.eq.f32.partialorder %v13, %v74
  %vm76 = vcmp.eq.f32.partialorder %v14, %v74
  %v77 = vsel %vm75, %v47, 256
  %v78 = vsel %vm76, %v48, 256
  %vm79 = vcmp.lt.s32.totalorder %v77, %v78
  %v80 = vsel %vm79, %v77, %v78
  %v81 = vand.u32 %v80, 65535
  %v82 = vshra.s32 %v80, 16
  %v83 = vcvt.s32.f32 %v81
  %v84 = vcvt.s32.f32 %v82
  %85 = vmin.xlane.f32.xlu0 %v84
  %v86 = vpop.xlane.xlu0 %85
  %vm87 = vcmp.eq.f32.partialorder %v84, %v86
  %v88 = vsel %vm87, %v83, inf
  %89 = vmin.xlane.f32.xlu0 %v88
  %v90 = vpop.xlane.xlu0 %89
  %v91 = vcvt.f32.s32 %v90
  %v92 = vcvt.f32.s32 %v86
  %v93 = vshll.u32 %v92, 16
  %v94 = vadd.s32 %v93, %v91
  %vm95 = vcmp.eq.s32.totalorder %v47, 0
  %v96 = vsel %vm95, %v39, 0.0
  %vm97 = vcmp.eq.s32.totalorder %v47, 1
  %v98 = vcvt.s32.f32 %v71
  %v99 = vsel %vm97, %v98, %v96
  %vm100 = vcmp.eq.s32.totalorder %v47, 2
  %v101 = vcvt.s32.f32 %v94
  %v102 = vsel %vm100, %v101, %v99
  %vm103 = vcmp.eq.s32.totalorder %v47, 3
  %v104 = vsel %vm103, %v45, %v102
  %105 = vst [vmem:[%s2] sm:$0xff] %v104
  // Predicated region
  $region10: #{combined_keypoint_loss.1} parent=0 // pred_check
    _
  $region11: #{combined_keypoint_loss.1} parent=0 // pred_check_branch
    %107 = sbr.rel (0) target = $region13
  $region12: #{combined_keypoint_loss.1} parent=0 // pred_region
    _
  $region13: #{combined_keypoint_loss.1} parent=0 // pred_fallthru
    _
  // Predicated region
  $region14: #{combined_keypoint_loss.1} parent=0 // pred_check
    _
  $region15: #{combined_keypoint_loss.1} parent=0 // pred_check_branch
    %109 = sbr.rel (0) target = $region17
  $region16: #{combined_keypoint_loss.1} parent=0 // pred_region
    _
  $region17: #{combined_keypoint_loss.1} parent=0 // pred_fallthru
    _

</llo_original>
